<compile_context>
chip_gen: v6e
topology: v6e:2x2x1
jax: 0.10.0
libtpu: 0.0.40
codegen_flags: <defaults>
</compile_context>

<pallas_src>
import jax
import jax.numpy as jnp
from jax.experimental import pallas as pl
from jax.experimental.pallas import tpu as pltpu


# ---------------------------------------------------------------------------
# Per-chip budgets / tile selection
# ---------------------------------------------------------------------------
def _vmem_limit_bytes(default_phys=64 << 20):
    """Scoped VMEM limit: ~3/4 of physical VMEM, capped at 96 MiB.

    v5e / v6e (128 MiB physical) -> 96 MiB;  v7x (64 MiB physical) -> 48 MiB.
    Falls back to the smallest generation if the query is unavailable.
    """
    phys = default_phys
    try:
        info = pltpu.get_tpu_info()
        cap = getattr(info, "vmem_capacity_bytes", None)
        if cap:
            phys = int(cap)
    except Exception:
        pass
    return int(min(96 << 20, (phys * 3) // 4))


def _choose_hw_tile(hw, bytes_per_lane, vmem_budget, max_lanes):
    """Largest lane tile (multiple of 128, divides hw, <= max_lanes) whose
    double-buffered streaming footprint fits in `vmem_budget`."""
    if hw % 128 != 0:          # defensive; the wrapper pads HW to a 128 multiple
        return hw
    cap = min(max_lanes, hw, vmem_budget // max(bytes_per_lane, 1))
    t = max(128, cap - cap % 128)
    while hw % t != 0:
        t -= 128
    return t


# ---------------------------------------------------------------------------
# Kernel 1: fused projection of true and fake samples
# ---------------------------------------------------------------------------
def _project_kernel(proj_ref, t_ref, f_ref, ot_ref, of_ref):
    # proj_ref: (P, C) bf16, pre-normalized, resident across the grid.
    # t_ref/f_ref: (1, C, HW_TILE) f32 streamed blocks (cast to bf16 in-kernel).
    # ot_ref/of_ref: (1, P, HW_TILE) bf16 lane-dense output blocks.
    proj = proj_ref[...]
    t = t_ref[0].astype(jnp.bfloat16)
    f = f_ref[0].astype(jnp.bfloat16)
    ot_ref[0] = jnp.dot(proj, t, preferred_element_type=jnp.float32).astype(ot_ref.dtype)
    of_ref[0] = jnp.dot(proj, f, preferred_element_type=jnp.float32).astype(of_ref.dtype)


# ---------------------------------------------------------------------------
# Kernel 2: blocked L1 reduction -> per-batch partial sums
# ---------------------------------------------------------------------------
def _l1_partial_kernel(a_ref, b_ref, out_ref):
    # a_ref/b_ref: (1, P, HW_TILE) bf16 blocks of the sorted projections.
    # out_ref: (1, 1) f32 SMEM block; constant index across the HW axis, so it
    # acts as the resident per-n accumulator (written back when n changes).
    @pl.when(pl.program_id(1) == 0)
    def _():
        out_ref[0, 0] = 0.0

    diff = a_ref[...].astype(jnp.float32) - b_ref[...].astype(jnp.float32)
    out_ref[0, 0] += jnp.sum(jnp.abs(diff))


# ---------------------------------------------------------------------------
# Wrapper
# ---------------------------------------------------------------------------
def swd_loss(fake_samples, true_samples, proj_key):
    N, C, H, W = true_samples.shape
    P = C // 2
    HW = H * W

    true_f = true_samples.reshape(N, C, HW).astype(jnp.float32)
    fake_f = fake_samples.reshape(N, C, HW).astype(jnp.float32)

    # Pad HW to a lane multiple with zeros that are identical in both inputs:
    # the padded columns project to exactly 0 in both true and fake, and adding
    # a common multiset of points leaves the sum of |sorted_true - sorted_fake|
    # unchanged, so dividing by the *unpadded* count keeps the mean exact.
    if HW % 128 != 0:
        hw_pad = -(-HW // 128) * 128
        pad_cfg = ((0, 0), (0, 0), (0, hw_pad - HW))
        true_f = jnp.pad(true_f, pad_cfg)
        fake_f = jnp.pad(fake_f, pad_cfg)
    else:
        hw_pad = HW

    # Deterministic stand-in for np.random.normal(size=(P, C)) in the torch
    # code; F.normalize(p=2, dim=1, eps=1e-12) hoisted out of the kernel.
    proj = jax.random.normal(proj_key, (P, C), dtype=jnp.float32)
    proj = proj / jnp.maximum(jnp.linalg.norm(proj, axis=1, keepdims=True), 1e-12)
    proj_bf16 = proj.astype(jnp.bfloat16)

    vmem_limit = _vmem_limit_bytes()
    budget = (vmem_limit * 6) // 10  # leave headroom for the resident proj + temps

    # Kernel 1 per-lane footprint (double-buffered): 2 f32 input columns of C
    # rows + 2 bf16 output columns of P rows.
    bpl1 = 2 * (2 * 4 * C + 2 * 2 * P)
    hw_tile1 = _choose_hw_tile(hw_pad, bpl1, budget, max_lanes=8192)
    n_hw1 = hw_pad // hw_tile1

    out_sds = jax.ShapeDtypeStruct((N, P, hw_pad), jnp.bfloat16)
    proj_true, proj_fake = pl.pallas_call(
        _project_kernel,
        out_shape=(out_sds, out_sds),
        grid=(N, n_hw1),
        in_specs=[
            # Constant block index -> projection tile stays resident in VMEM.
            pl.BlockSpec((P, C), lambda n, h: (0, 0)),
            pl.BlockSpec((1, C, hw_tile1), lambda n, h: (n, 0, h)),
            pl.BlockSpec((1, C, hw_tile1), lambda n, h: (n, 0, h)),
        ],
        out_specs=(
            pl.BlockSpec((1, P, hw_tile1), lambda n, h: (n, 0, h)),
            pl.BlockSpec((1, P, hw_tile1), lambda n, h: (n, 0, h)),
        ),
        compiler_params=pltpu.CompilerParams(
            dimension_semantics=("parallel", "parallel"),
            vmem_limit_bytes=vmem_limit,
        ),
    )(proj_bf16, true_f, fake_f)

    # TODO(synk): torch.sort has no Pallas/Mosaic lowering; the per-row sort
    # along HW is done in plain JAX between the two kernels.
    sorted_true = jnp.sort(proj_true, axis=2)
    sorted_fake = jnp.sort(proj_fake, axis=2)

    # Kernel 2 per-lane footprint (double-buffered): 2 bf16 input columns of P
    # rows; no resident projection or MXU constraint, so allow bigger tiles.
    bpl2 = 2 * (2 * 2 * P)
    hw_tile2 = _choose_hw_tile(hw_pad, bpl2, budget, max_lanes=16384)
    n_hw2 = hw_pad // hw_tile2

    partial = pl.pallas_call(
        _l1_partial_kernel,
        out_shape=jax.ShapeDtypeStruct((N, 1), jnp.float32),
        grid=(N, n_hw2),
        in_specs=[
            pl.BlockSpec((1, P, hw_tile2), lambda n, h: (n, 0, h)),
            pl.BlockSpec((1, P, hw_tile2), lambda n, h: (n, 0, h)),
        ],
        out_specs=pl.BlockSpec((1, 1), lambda n, h: (n, 0),
                               memory_space=pltpu.MemorySpace.SMEM),
        compiler_params=pltpu.CompilerParams(
            dimension_semantics=("parallel", "arbitrary"),
            vmem_limit_bytes=vmem_limit,
        ),
    )(sorted_true, sorted_fake)

    # Mean over the *unpadded* element count.
    return jnp.sum(partial) / float(N * P * HW)


# ---------------------------------------------------------------------------
# Pure-JAX reference mirroring the PyTorch forward with the same dtype
# pipeline as the kernel (bf16 matmul inputs, f32 accumulate, bf16
# intermediates, f32 L1) so the comparison is apples-to-apples.
# ---------------------------------------------------------------------------
def _swd_loss_ref(fake_samples, true_samples, proj_key):
    N, C, H, W = true_samples.shape
    P = C // 2
    t = true_samples.reshape(N, C, -1)
    f = fake_samples.reshape(N, C, -1)
    proj = jax.random.normal(proj_key, (P, C), dtype=jnp.float32)
    proj = proj / jnp.maximum(jnp.linalg.norm(proj, axis=1, keepdims=True), 1e-12)
    pt = jnp.einsum("pc,nck->npk", proj.astype(jnp.bfloat16),
                    t.astype(jnp.bfloat16),
                    preferred_element_type=jnp.float32).astype(jnp.bfloat16)
    pf = jnp.einsum("pc,nck->npk", proj.astype(jnp.bfloat16),
                    f.astype(jnp.bfloat16),
                    preferred_element_type=jnp.float32).astype(jnp.bfloat16)
    st = jnp.sort(pt, axis=2).astype(jnp.float32)
    sf = jnp.sort(pf, axis=2).astype(jnp.float32)
    return jnp.mean(jnp.abs(st - sf))


if __name__ == "__main__":
    key = jax.random.PRNGKey(0)
    k_fake, k_true, k_proj = jax.random.split(key, 3)

    N, C, H, W = 2, 4, 16, 16
    fake = jax.random.normal(k_fake, (N, C, H, W), dtype=jnp.float32)
    true = jax.random.normal(k_true, (N, C, H, W), dtype=jnp.float32)

    out = jax.block_until_ready(swd_loss(fake, true, k_proj))
    ref = jax.block_until_ready(_swd_loss_ref(fake, true, k_proj))
    assert jnp.allclose(out, ref, rtol=1e-2, atol=1e-3), (out, ref)

    print("KERNEL_OK")
</pallas_src>

<mosaic_0001>
module attributes {stable_mosaic.version = 11 : i64} {
  func.func @_project_kernel(%arg0: i32, %arg1: i32, %arg2: memref<2x4xbf16, #tpu.memory_space<vmem>>, %arg3: memref<1x4x256xf32, #tpu.memory_space<vmem>>, %arg4: memref<1x4x256xf32, #tpu.memory_space<vmem>>, %arg5: memref<1x2x256xbf16, #tpu.memory_space<vmem>>, %arg6: memref<1x2x256xbf16, #tpu.memory_space<vmem>>) attributes {dimension_semantics = [#tpu.dimension_semantics<parallel>, #tpu.dimension_semantics<parallel>], iteration_bounds = array<i64: 2, 1>, scalar_prefetch = 0 : i64, scratch_operands = 0 : i64, tpu.core_type = #tpu.core_type<tc>, window_params = [{pipeline_mode = #tpu.pipeline_mode<synchronous>, transform_indices = @transform_0, window_bounds = array<i64: 2, 4>}, {transform_indices = @transform_1, window_bounds = array<i64: 1, 4, 256>}, {transform_indices = @transform_2, window_bounds = array<i64: 1, 4, 256>}, {transform_indices = @transform_3, window_bounds = array<i64: 1, 2, 256>}, {transform_indices = @transform_4, window_bounds = array<i64: 1, 2, 256>}]} {
    %c0 = arith.constant 0 : index
    %c0_0 = arith.constant 0 : index
    %0 = vector.load %arg2[%c0, %c0_0] : memref<2x4xbf16, #tpu.memory_space<vmem>>, vector<2x4xbf16>
    %c0_1 = arith.constant 0 : index
    %c0_2 = arith.constant 0 : index
    %c0_3 = arith.constant 0 : index
    %1 = vector.load %arg3[%c0_1, %c0_2, %c0_3] : memref<1x4x256xf32, #tpu.memory_space<vmem>>, vector<1x4x256xf32>
    %2 = vector.shape_cast %1 : vector<1x4x256xf32> to vector<4x256xf32>
    %3 = arith.truncf %2 : vector<4x256xf32> to vector<4x256xbf16>
    %c0_4 = arith.constant 0 : index
    %c0_5 = arith.constant 0 : index
    %c0_6 = arith.constant 0 : index
    %4 = vector.load %arg4[%c0_4, %c0_5, %c0_6] : memref<1x4x256xf32, #tpu.memory_space<vmem>>, vector<1x4x256xf32>
    %5 = vector.shape_cast %4 : vector<1x4x256xf32> to vector<4x256xf32>
    %6 = arith.truncf %5 : vector<4x256xf32> to vector<4x256xbf16>
    %cst = arith.constant dense<0.000000e+00> : vector<2x256xf32>
    %7 = tpu.matmul %0, %3, %cst {dimension_numbers = #tpu.dot_dimension_numbers<[1], [0], [0], [1], [0, 0, 1, 1], [], []>} : vector<2x4xbf16>, vector<4x256xbf16>, vector<2x256xf32> -> vector<2x256xf32>
    %8 = arith.truncf %7 : vector<2x256xf32> to vector<2x256xbf16>
    %c0_7 = arith.constant 0 : index
    %c0_8 = arith.constant 0 : index
    %c0_9 = arith.constant 0 : index
    %9 = vector.load %arg5[%c0_7, %c0_8, %c0_9] : memref<1x2x256xbf16, #tpu.memory_space<vmem>>, vector<1x2x256xbf16>
    %10 = vector.shape_cast %9 : vector<1x2x256xbf16> to vector<2x256xbf16>
    %11 = vector.shape_cast %8 : vector<2x256xbf16> to vector<1x2x256xbf16>
    tpu.vector_store %arg5[%c0_7, %c0_8, %c0_9], %11 {strides = array<i32>} : memref<1x2x256xbf16, #tpu.memory_space<vmem>>, vector<1x2x256xbf16>,
    %cst_10 = arith.constant dense<0.000000e+00> : vector<2x256xf32>
    %12 = tpu.matmul %0, %6, %cst_10 {dimension_numbers = #tpu.dot_dimension_numbers<[1], [0], [0], [1], [0, 0, 1, 1], [], []>} : vector<2x4xbf16>, vector<4x256xbf16>, vector<2x256xf32> -> vector<2x256xf32>
    %13 = arith.truncf %12 : vector<2x256xf32> to vector<2x256xbf16>
    %c0_11 = arith.constant 0 : index
    %c0_12 = arith.constant 0 : index
    %c0_13 = arith.constant 0 : index
    %14 = vector.load %arg6[%c0_11, %c0_12, %c0_13] : memref<1x2x256xbf16, #tpu.memory_space<vmem>>, vector<1x2x256xbf16>
    %15 = vector.shape_cast %14 : vector<1x2x256xbf16> to vector<2x256xbf16>
    %16 = vector.shape_cast %13 : vector<2x256xbf16> to vector<1x2x256xbf16>
    tpu.vector_store %arg6[%c0_11, %c0_12, %c0_13], %16 {strides = array<i32>} : memref<1x2x256xbf16, #tpu.memory_space<vmem>>, vector<1x2x256xbf16>,
    return
  }
  func.func @transform_0(%arg0: i32, %arg1: i32) -> (i32, i32) {
    %c0_i32 = arith.constant 0 : i32
    %c0_i32_0 = arith.constant 0 : i32
    %c0_i32_1 = arith.constant 0 : i32
    return %c0_i32, %c0_i32_0 : i32, i32
  }
  func.func @transform_1(%arg0: i32, %arg1: i32) -> (i32, i32, i32) {
    %c0_i32 = arith.constant 0 : i32
    %c0_i32_0 = arith.constant 0 : i32
    return %arg0, %c0_i32, %arg1 : i32, i32, i32
  }
  func.func @transform_2(%arg0: i32, %arg1: i32) -> (i32, i32, i32) {
    %c0_i32 = arith.constant 0 : i32
    %c0_i32_0 = arith.constant 0 : i32
    return %arg0, %c0_i32, %arg1 : i32, i32, i32
  }
  func.func @transform_3(%arg0: i32, %arg1: i32) -> (i32, i32, i32) {
    %c0_i32 = arith.constant 0 : i32
    %c0_i32_0 = arith.constant 0 : i32
    return %arg0, %c0_i32, %arg1 : i32, i32, i32
  }
  func.func @transform_4(%arg0: i32, %arg1: i32) -> (i32, i32, i32) {
    %c0_i32 = arith.constant 0 : i32
    %c0_i32_0 = arith.constant 0 : i32
    return %arg0, %c0_i32, %arg1 : i32, i32, i32
  }
}

</mosaic_0001>

<llo_original>
// kernel: tpu_custom_call.1
$region0: #{tpu_custom_call.1}
  #allocation0 [shape = 'u32[]', space=smem, size = 0x4, offset = 0x4, fixed_abs, tag = 'smem constant byte address 0x4 - core index']
  #allocation1 [shape = 'u32[144,128]{1,0:T(1,128)}', space=vmem, size = 0x12000, scoped, tag = 'internal scratch']
  %s0 = inlined_call_operand.hbm [shape: bf16[2,4], index: 0, kind: input, shape index: {}]
  %s1 = inlined_call_operand.hbm [shape: f32[2,4,256], index: 1, kind: input, shape index: {}]
  %s2 = inlined_call_operand.hbm [shape: f32[2,4,256], index: 2, kind: input, shape index: {}]
  %s3 = inlined_call_operand.hbm [shape: bf16[2,2,256], index: 3, kind: output, shape index: {0}]
  %s4 = inlined_call_operand.hbm [shape: bf16[2,2,256], index: 4, kind: output, shape index: {1}]
  %5 = xla_tuple %s3, %s4
  %s6 = sld [smem:[#allocation0]]
  $region65: #{tpu_custom_call.1} parent=0
    _
  %s8 = ssub.s32 1, %s6
  %s9 = scalar_select 0, %s8, %s6
  $region1: #{tpu_custom_call.1} parent=0
    #allocation2 [shape = 'u8[512]{0}', space=vmem, size = 0x400, scoped, tag = 'input window, operand 0, single buffered']
    #allocation3 [shape = 's32[2]{0}', space=sflag, size = 0x8, scoped, tag = 'scoped memory for tpu_custom_call.1']
    #allocation4 [shape = 's32[2]{0}', space=sflag, size = 0x8, scoped, tag = 'scoped memory for tpu_custom_call.1']
    #allocation5 [shape = 'u8[8192]{0}', space=vmem, size = 0x2000, scoped, tag = 'input window, operand 1']
    #allocation6 [shape = 's32[2]{0}', space=sflag, size = 0x8, scoped, tag = 'scoped memory for tpu_custom_call.1']
    #allocation7 [shape = 'u8[8192]{0}', space=vmem, size = 0x2000, scoped, tag = 'input window, operand 2']
    #allocation8 [shape = 'u8[2048]{0}', space=vmem, size = 0x800, scoped, tag = 'output window, operand 0']
    #allocation9 [shape = 'u8[2048]{0}', space=vmem, size = 0x800, scoped, tag = 'output window, operand 1']
    #allocation10 [shape = 's32[2]{0}', space=sflag, size = 0x8, scoped, tag = 'scoped memory for tpu_custom_call.1']
    %10 = vsyncpa [#allocation3], 0
    %11 = vsyncpa [#allocation6], 0
    %s12 = scalar_lea.sflag [#allocation6], 1
    %13 = vsyncpa %s12, 0
    %14 = vsyncpa [#allocation4], 0
    %s15 = scalar_lea.sflag [#allocation4], 1
    %16 = vsyncpa %s15, 0
    %17 = vsyncpa [#allocation10], 0
    %s18 = scalar_lea.sflag [#allocation10], 1
    %19 = vsyncpa %s18, 0
    loop: start=0, step=1, limit=4
    $region2: #{tpu_custom_call.1} parent=1 // loop_pre_header
      _
    $region3: #{tpu_custom_call.1} parent=1 // loop_header
      %s21 = sphi 0, %s25
      %p22 = scmp.ge.s32.totalorder %s21, 4
      %s28 = sphi 0, %s40
      %s29 = sphi 0, %s36
      %s30 = sphi 0, %s28
      %s31 = sphi 0, %s29
      %s32 = sphi 0, %s30
      %s33 = sphi 0, %s31
      %s41 = sphi 0, %s41
      %s43 = sphi 0, %s41
      %s44 = sphi 0, %s43
      %s58 = sphi 0, %s44
      %s66 = sphi 0, %s68
      %s69 = sphi 0, %s66
      %s70 = sphi 0, %s69
      %s86 = sphi 0, %s70
      %s94 = sphi 0, %s96
      %s97 = sphi 0, %s94
      %s98 = sphi 0, %s97
      %s114 = sphi 0, %s98
      %s122 = sphi 0, %s124
      %s125 = sphi 0, %s122
      %s126 = sphi 0, %s125
      %s142 = sphi 0, %s126
      %s150 = sphi 0, %s152
      %s153 = sphi 0, %s150
      %s154 = sphi 0, %s153
      %s170 = sphi 0, %s154
    $region4: #{tpu_custom_call.1} parent=1 // loop_header_branch
      %24 = sbr.rel (%p22) target = $region8
    $region5: #{tpu_custom_call.1} parent=1 // loop_body
      %s26 = ssub.s32 %s21, 1
      %s27 = ssub.s32 %s21, 2
      %s34 = sadd.s32 1, %s29
      %p35 = scmp.ge.s32.totalorder %s34, 1
      %s36 = scalar_select %p35, 0, %s34
      %s37 = sadd.s32 1, %s28
      %s38 = scalar_select %p35, %s37, %s28
      %p39 = scmp.ge.s32.totalorder %s38, 2
      %s40 = scalar_select %p39, 0, %s38
      %s42 = sadd.s32 %s41, 1
      %p45 = scmp.eq.s32.totalorder %s21, 1
      %p46 = scmp.ne.s32.totalorder %s41, %s43
      %p47 = scmp.eq.s32.totalorder %s21, 0
      %p48 = por %p46, %p47
      %p49 = scmp.ne.s32.totalorder %s41, %s43
      %p50 = scmp.eq.s32.totalorder %s26, 1
      %p51 = por %p49, %p50
      %p52 = scmp.ne.s32.totalorder %s43, %s44
      %p53 = scmp.eq.s32.totalorder %s26, 0
      %p54 = por %p52, %p53
      %p55 = scmp.ne.s32.totalorder %s43, %s44
      %p56 = scmp.eq.s32.totalorder %s27, 1
      %p57 = por %p55, %p56
      %p59 = scmp.ne.s32.totalorder %s44, %s58
      %p60 = scmp.eq.s32.totalorder %s27, 0
      %p61 = por %p59, %p60
      %s62 = ssub.s32 %s28, %s40
      %s63 = ssub.s32 %s29, %s36
      %s64 = sor.u32 %s62, %s63
      %p65 = scmp.eq.s32.totalorder %s64, 0
      %s67 = sadd.s32 %s66, 1
      %s68 = scalar_select %p65, %s66, %s67
      %p71 = pneg %p65
      %p72 = scmp.eq.s32.totalorder %s21, 1
      %p73 = por %p71, %p72
      %p74 = scmp.ne.s32.totalorder %s66, %s69
      %p75 = scmp.eq.s32.totalorder %s21, 0
      %p76 = por %p74, %p75
      %p77 = scmp.ne.s32.totalorder %s66, %s69
      %p78 = scmp.eq.s32.totalorder %s26, 1
      %p79 = por %p77, %p78
      %p80 = scmp.ne.s32.totalorder %s69, %s70
      %p81 = scmp.eq.s32.totalorder %s26, 0
      %p82 = por %p80, %p81
      %p83 = scmp.ne.s32.totalorder %s69, %s70
      %p84 = scmp.eq.s32.totalorder %s27, 1
      %p85 = por %p83, %p84
      %p87 = scmp.ne.s32.totalorder %s70, %s86
      %p88 = scmp.eq.s32.totalorder %s27, 0
      %p89 = por %p87, %p88
      %s90 = ssub.s32 %s28, %s40
      %s91 = ssub.s32 %s29, %s36
      %s92 = sor.u32 %s90, %s91
      %p93 = scmp.eq.s32.totalorder %s92, 0
      %s95 = sadd.s32 %s94, 1
      %s96 = scalar_select %p93, %s94, %s95
      %p99 = pneg %p93
      %p100 = scmp.eq.s32.totalorder %s21, 1
      %p101 = por %p99, %p100
      %p102 = scmp.ne.s32.totalorder %s94, %s97
      %p103 = scmp.eq.s32.totalorder %s21, 0
      %p104 = por %p102, %p103
      %p105 = scmp.ne.s32.totalorder %s94, %s97
      %p106 = scmp.eq.s32.totalorder %s26, 1
      %p107 = por %p105, %p106
      %p108 = scmp.ne.s32.totalorder %s97, %s98
      %p109 = scmp.eq.s32.totalorder %s26, 0
      %p110 = por %p108, %p109
      %p111 = scmp.ne.s32.totalorder %s97, %s98
      %p112 = scmp.eq.s32.totalorder %s27, 1
      %p113 = por %p111, %p112
      %p115 = scmp.ne.s32.totalorder %s98, %s114
      %p116 = scmp.eq.s32.totalorder %s27, 0
      %p117 = por %p115, %p116
      %s118 = ssub.s32 %s28, %s40
      %s119 = ssub.s32 %s29, %s36
      %s120 = sor.u32 %s118, %s119
      %p121 = scmp.eq.s32.totalorder %s120, 0
      %s123 = sadd.s32 %s122, 1
      %s124 = scalar_select %p121, %s122, %s123
      %p127 = pneg %p121
      %p128 = scmp.eq.s32.totalorder %s21, 1
      %p129 = por %p127, %p128
      %p130 = scmp.ne.s32.totalorder %s122, %s125
      %p131 = scmp.eq.s32.totalorder %s21, 0
      %p132 = por %p130, %p131
      %p133 = scmp.ne.s32.totalorder %s122, %s125
      %p134 = scmp.eq.s32.totalorder %s26, 1
      %p135 = por %p133, %p134
      %p136 = scmp.ne.s32.totalorder %s125, %s126
      %p137 = scmp.eq.s32.totalorder %s26, 0
      %p138 = por %p136, %p137
      %p139 = scmp.ne.s32.totalorder %s125, %s126
      %p140 = scmp.eq.s32.totalorder %s27, 1
      %p141 = por %p139, %p140
      %p143 = scmp.ne.s32.totalorder %s126, %s142
      %p144 = scmp.eq.s32.totalorder %s27, 0
      %p145 = por %p143, %p144
      %s146 = ssub.s32 %s28, %s40
      %s147 = ssub.s32 %s29, %s36
      %s148 = sor.u32 %s146, %s147
      %p149 = scmp.eq.s32.totalorder %s148, 0
      %s151 = sadd.s32 %s150, 1
      %s152 = scalar_select %p149, %s150, %s151
      %p155 = pneg %p149
      %p156 = scmp.eq.s32.totalorder %s21, 1
      %p157 = por %p155, %p156
      %p158 = scmp.ne.s32.totalorder %s150, %s153
      %p159 = scmp.eq.s32.totalorder %s21, 0
      %p160 = por %p158, %p159
      %p161 = scmp.ne.s32.totalorder %s150, %s153
      %p162 = scmp.eq.s32.totalorder %s26, 1
      %p163 = por %p161, %p162
      %p164 = scmp.ne.s32.totalorder %s153, %s154
      %p165 = scmp.eq.s32.totalorder %s26, 0
      %p166 = por %p164, %p165
      %p167 = scmp.ne.s32.totalorder %s153, %s154
      %p168 = scmp.eq.s32.totalorder %s27, 1
      %p169 = por %p167, %p168
      %p171 = scmp.ne.s32.totalorder %s154, %s170
      %p172 = scmp.eq.s32.totalorder %s27, 0
      %p173 = por %p171, %p172
      %p174 = scmp.le.s32.totalorder 1, %s21
      %p175 = scmp.lt.s32.totalorder %s21, 3
      %p176 = pnand %p174, %p175
      %p177 = pneg %p176
      // Predicated region
      $region9: #{tpu_custom_call.1} parent=5 // pred_check
        _
      $region10: #{tpu_custom_call.1} parent=5 // pred_check_branch
        %179 = sbr.rel (%p176) target = $region12
      $region11: #{tpu_custom_call.1} parent=5 // pred_region
        %s180 = ssub.s32 %s21, 1
        // Predicated region
        $region13: #{tpu_custom_call.1} parent=11 // pred_check
          %p181 = pneg %p54
        $region14: #{tpu_custom_call.1} parent=11 // pred_check_branch
          %183 = sbr.rel (%p181) target = $region16
        $region15: #{tpu_custom_call.1} parent=11 // pred_region
          %s185 = ssub.s32 16, 16
          %186 = vsyncadd [#allocation3], %s185
          %s188 = sshll.u32 [#allocation2], 4
          %s189 = int_to_ptr.vmem [resolvable:$true] %s188
          %191 = dma.hbm_to_vmem [thread:$0]  %s0, 16, %s189, [#allocation3]
        $region16: #{tpu_custom_call.1} parent=11 // pred_fallthru
          _
      $region12: #{tpu_custom_call.1} parent=5 // pred_fallthru
        _
      %p192 = scmp.lt.s32.totalorder %s21, 2
      // Predicated region
      $region17: #{tpu_custom_call.1} parent=5 // pred_check
        %p193 = pneg %p192
      $region18: #{tpu_custom_call.1} parent=5 // pred_check_branch
        %195 = sbr.rel (%p193) target = $region20
      $region19: #{tpu_custom_call.1} parent=5 // pred_region
        // Predicated region
        $region21: #{tpu_custom_call.1} parent=19 // pred_check
          %p196 = pneg %p76
        $region22: #{tpu_custom_call.1} parent=19 // pred_check_branch
          %198 = sbr.rel (%p196) target = $region24
        $region23: #{tpu_custom_call.1} parent=19 // pred_region
          %s199 = sand.u32 %s21, 1
          %s200 = scalar_lea.sflag [#allocation6], %s199
          %s201 = sand.u32 %s66, 1
          %s202 = smul.addr %s201, 8
          %s203 = scalar_lea.vmem [#allocation5], %s202
          %s204 = smul.u32 2, %s29
          %s206 = ssub.s32 128, 128
          %207 = vsyncadd %s200, %s206
          %s208 = smul.addr %s28, 2
          %s209 = sadd.s32 %s204, %s208
          %s210 = smul.addr %s209, 64
          %s211 = scalar_lea.hbm %s1, %s210
          %s213 = sshll.u32 %s203, 4
          %s214 = int_to_ptr.vmem [resolvable:$true] %s213
          %216 = dma.hbm_to_vmem [thread:$0]  %s211, 128, %s214, %s200
        $region24: #{tpu_custom_call.1} parent=19 // pred_fallthru
          _
        // Predicated region
        $region25: #{tpu_custom_call.1} parent=19 // pred_check
          %p217 = pneg %p104
        $region26: #{tpu_custom_call.1} parent=19 // pred_check_branch
          %219 = sbr.rel (%p217) target = $region28
        $region27: #{tpu_custom_call.1} parent=19 // pred_region
          %s220 = sand.u32 %s21, 1
          %s221 = scalar_lea.sflag [#allocation6], %s220
          %s222 = sand.u32 %s94, 1
          %s223 = smul.addr %s222, 8
          %s224 = scalar_lea.vmem [#allocation7], %s223
          %s225 = smul.u32 2, %s29
          %s227 = ssub.s32 128, 128
          %228 = vsyncadd %s221, %s227
          %s229 = smul.addr %s28, 2
          %s230 = sadd.s32 %s225, %s229
          %s231 = smul.addr %s230, 64
          %s232 = scalar_lea.hbm %s2, %s231
          %s234 = sshll.u32 %s224, 4
          %s235 = int_to_ptr.vmem [resolvable:$true] %s234
          %237 = dma.hbm_to_vmem [thread:$0]  %s232, 128, %s235, %s221
        $region28: #{tpu_custom_call.1} parent=19 // pred_fallthru
          _
      $region20: #{tpu_custom_call.1} parent=5 // pred_fallthru
        _
      %p238 = scmp.le.s32.totalorder 1, %s21
      %p239 = scmp.lt.s32.totalorder %s21, 3
      %p240 = pnand %p238, %p239
      %p241 = pneg %p240
      // Predicated region
      $region29: #{tpu_custom_call.1} parent=5 // pred_check
        _
      $region30: #{tpu_custom_call.1} parent=5 // pred_check_branch
        %243 = sbr.rel (%p240) target = $region32
      $region31: #{tpu_custom_call.1} parent=5 // pred_region
        %s244 = ssub.s32 %s21, 1
        // Predicated region
        $region33: #{tpu_custom_call.1} parent=31 // pred_check
          %p245 = pneg %p54
        $region34: #{tpu_custom_call.1} parent=31 // pred_check_branch
          %247 = sbr.rel (%p245) target = $region36
        $region35: #{tpu_custom_call.1} parent=31 // pred_region
          %248 = dma.done [#allocation3], 16
        $region36: #{tpu_custom_call.1} parent=31 // pred_fallthru
          _
        %s249 = sand.u32 %s26, 1
        %s250 = scalar_lea.sflag [#allocation6], %s249
        %s251 = sand.u32 %s69, 1
        %s252 = smul.addr %s251, 8
        %s253 = scalar_lea.vmem [#allocation5], %s252
        // Predicated region
        $region37: #{tpu_custom_call.1} parent=31 // pred_check
          %p254 = pneg %p82
        $region38: #{tpu_custom_call.1} parent=31 // pred_check_branch
          %256 = sbr.rel (%p254) target = $region40
        $region39: #{tpu_custom_call.1} parent=31 // pred_region
          %257 = dma.done %s250, 128
        $region40: #{tpu_custom_call.1} parent=31 // pred_fallthru
          _
        %s258 = sand.u32 %s26, 1
        %s259 = scalar_lea.sflag [#allocation6], %s258
        %s260 = sand.u32 %s97, 1
        %s261 = smul.addr %s260, 8
        %s262 = scalar_lea.vmem [#allocation7], %s261
        // Predicated region
        $region41: #{tpu_custom_call.1} parent=31 // pred_check
          %p263 = pneg %p110
        $region42: #{tpu_custom_call.1} parent=31 // pred_check_branch
          %265 = sbr.rel (%p263) target = $region44
        $region43: #{tpu_custom_call.1} parent=31 // pred_region
          %266 = dma.done %s259, 128
        $region44: #{tpu_custom_call.1} parent=31 // pred_fallthru
          _
        %p267 = pneg %p54
        %p268 = pneg %p51
        %s269 = sand.u32 %s26, 1
        %s270 = scalar_lea.sflag [#allocation6], %s269
        %s271 = sand.u32 %s69, 1
        %s272 = smul.addr %s271, 8
        %s273 = scalar_lea.vmem [#allocation5], %s272
        %p274 = pneg %p82
        %p275 = pneg %p79
        %s276 = sand.u32 %s26, 1
        %s277 = scalar_lea.sflag [#allocation6], %s276
        %s278 = sand.u32 %s97, 1
        %s279 = smul.addr %s278, 8
        %s280 = scalar_lea.vmem [#allocation7], %s279
        %p281 = pneg %p110
        %p282 = pneg %p107
        %p283 = pneg %p138
        %p284 = pneg %p135
        %s285 = sand.u32 %s125, 1
        %s286 = scalar_lea.sflag [#allocation4], %s285
        %s287 = sand.u32 %s125, 1
        %s288 = smul.addr %s287, 2
        %s289 = scalar_lea.vmem [#allocation8], %s288
        %p290 = pneg %p166
        %p291 = pneg %p163
        %s292 = sand.u32 %s153, 1
        %s293 = scalar_lea.sflag [#allocation10], %s292
        %s294 = sand.u32 %s153, 1
        %s295 = smul.addr %s294, 2
        %s296 = scalar_lea.vmem [#allocation9], %s295
        %s297 = smul.u32 2, %s31
        %s298 = smul.u32 2, %s31
        %s299 = smul.u32 2, %s31
        %s300 = smul.u32 2, %s31
        %v302 = vld [vmem:[#allocation2] sm:$0x1]
        %v303 = vld [vmem:[%s253] sm:$0xff]
        %v305 = vcombine.high %v303, %v303
        %v307 = vpack.c.bf16 %v303, %v303
        %v308 = vpack.c.bf16 %v305, %v305
        %v309 = vld [vmem:[%s262] sm:$0xff]
        %v311 = vcombine.high %v309, %v309
        %v313 = vpack.c.bf16 %v309, %v309
        %v314 = vpack.c.bf16 %v311, %v311
        %vm315 = vcmask 31744
        %v317 = vsel %vm315, %v302, 0
        %vm319 = vcmask 1041408
        %v321 = vsel %vm319, %v307, 0
        %v324 = vsel %vm319, %v308, 0
        %326 = vmatprep.subr.bf16.mxu0 0
        %327 = vmatpush1.bf16.msra.mxu0 0
        %328 = vmatprep.subr.bf16.mxu0 0
        %329 = vmatpush1.bf16.msra.mxu0 0
        %330 = vmatprep.subr.bf16.mxu0 0
        %331 = vmatpush1.bf16.msra.mxu0 0
        %332 = vmatprep.subr.bf16.mxu0 0
        %333 = vmatpush1.bf16.msra.mxu0 0
        %334 = vmatprep.subr.bf16.mxu0 0
        %335 = vmatpush1.bf16.msra.mxu0 0
        %336 = vmatprep.subr.bf16.mxu0 0
        %337 = vmatpush1.bf16.msra.mxu0 0
        %338 = vmatprep.subr.bf16.mxu0 0
        %339 = vmatpush1.bf16.msra.mxu0 0
        %340 = vmatprep.subr.bf16.mxu0 %v324
        %341 = vmatpush1.bf16.msra.mxu0 %v321
        %342 = vmatprep.subr.bf16.mxu0 0
        %343 = vmatpush2.bf16.msra.mxu0 0
        %344 = vmatprep.subr.bf16.mxu0 0
        %345 = vmatpush2.bf16.msra.mxu0 0
        %346 = vmatprep.subr.bf16.mxu0 0
        %347 = vmatpush2.bf16.msra.mxu0 0
        %348 = vmatprep.subr.bf16.mxu0 0
        %349 = vmatpush2.bf16.msra.mxu0 0
        %350 = vmatprep.subr.bf16.mxu0 0
        %351 = vmatpush2.bf16.msra.mxu0 0
        %352 = vmatprep.subr.bf16.mxu0 0
        %353 = vmatpush2.bf16.msra.mxu0 0
        %354 = vmatprep.subr.bf16.mxu0 0
        %355 = vmatpush2.bf16.msra.mxu0 0
        %356 = vmatprep.subr.bf16.mxu0 0
        %357 = vmatpush2.bf16.msra.mxu0 0
        %358 = vmatprep.mubr.bf16.mxu0 0
        %359 = vmatmul.mubr.bf16.gmra.mxu0 %v317
        %v360 = vpop.f32.mrf.mxu0
        %v361 = vadd.f32 0.0, %v360
        %v362 = vpop.f32.mrf.mxu0
        %v363 = vadd.f32 0.0, %v362
        %v364 = vpop.f32.mrf.mxu0
        %v365 = vpop.f32.mrf.mxu0
        %366 = vdwg.mxu0
        %v367 = vpack.c.bf16 %v361, %v361
        %v368 = vpack.c.bf16 %v363, %v363
        %v371 = vcombine.low %v367, %v368
        %v373 = vunpack.c.l.s4 1966171168
        %v374 = vunpack.c.0.s8 %v373
        %v375 = vlaneseq
        %v376 = vshrl.u32 %v375, 7
        %v377 = vsub.s32 %v374, %v376
        %v378 = vrot.slane %v371, %v377
        %v380 = vunpack.c.l.s4 1966171168
        %v381 = vunpack.c.0.s8 %v380
        %v382 = vlaneseq
        %v383 = vshrl.u32 %v382, 7
        %v384 = vsub.s32 %v381, %v383
        %v385 = vrot.slane %v378, %v384
        %387 = vst [vmem:[%s289] sm:$0x3] %v385
        %v389 = vsel %vm319, %v313, 0
        %v392 = vsel %vm319, %v314, 0
        %394 = vmatprep.subr.bf16.mxu0 0
        %395 = vmatpush1.bf16.msra.mxu0 0
        %396 = vmatprep.subr.bf16.mxu0 0
        %397 = vmatpush1.bf16.msra.mxu0 0
        %398 = vmatprep.subr.bf16.mxu0 0
        %399 = vmatpush1.bf16.msra.mxu0 0
        %400 = vmatprep.subr.bf16.mxu0 0
        %401 = vmatpush1.bf16.msra.mxu0 0
        %402 = vmatprep.subr.bf16.mxu0 0
        %403 = vmatpush1.bf16.msra.mxu0 0
        %404 = vmatprep.subr.bf16.mxu0 0
        %405 = vmatpush1.bf16.msra.mxu0 0
        %406 = vmatprep.subr.bf16.mxu0 0
        %407 = vmatpush1.bf16.msra.mxu0 0
        %408 = vmatprep.subr.bf16.mxu0 %v392
        %409 = vmatpush1.bf16.msra.mxu0 %v389
        %410 = vmatprep.subr.bf16.mxu0 0
        %411 = vmatpush2.bf16.msra.mxu0 0
        %412 = vmatprep.subr.bf16.mxu0 0
        %413 = vmatpush2.bf16.msra.mxu0 0
        %414 = vmatprep.subr.bf16.mxu0 0
        %415 = vmatpush2.bf16.msra.mxu0 0
        %416 = vmatprep.subr.bf16.mxu0 0
        %417 = vmatpush2.bf16.msra.mxu0 0
        %418 = vmatprep.subr.bf16.mxu0 0
        %419 = vmatpush2.bf16.msra.mxu0 0
        %420 = vmatprep.subr.bf16.mxu0 0
        %421 = vmatpush2.bf16.msra.mxu0 0
        %422 = vmatprep.subr.bf16.mxu0 0
        %423 = vmatpush2.bf16.msra.mxu0 0
        %424 = vmatprep.subr.bf16.mxu0 0
        %425 = vmatpush2.bf16.msra.mxu0 0
        %426 = vmatprep.mubr.bf16.mxu0 0
        %427 = vmatmul.mubr.bf16.gmra.mxu0 %v317
        %v428 = vpop.f32.mrf.mxu0
        %v429 = vadd.f32 0.0, %v428
        %v430 = vpop.f32.mrf.mxu0
        %v431 = vadd.f32 0.0, %v430
        %v432 = vpop.f32.mrf.mxu0
        %v433 = vpop.f32.mrf.mxu0
        %434 = vdwg.mxu0
        %v435 = vpack.c.bf16 %v429, %v429
        %v436 = vpack.c.bf16 %v431, %v431
        %v439 = vcombine.low %v435, %v436
        %v441 = vunpack.c.l.s4 1966171168
        %v442 = vunpack.c.0.s8 %v441
        %v443 = vlaneseq
        %v444 = vshrl.u32 %v443, 7
        %v445 = vsub.s32 %v442, %v444
        %v446 = vrot.slane %v439, %v445
        %v448 = vunpack.c.l.s4 1966171168
        %v449 = vunpack.c.0.s8 %v448
        %v450 = vlaneseq
        %v451 = vshrl.u32 %v450, 7
        %v452 = vsub.s32 %v449, %v451
        %v453 = vrot.slane %v446, %v452
        %455 = vst [vmem:[%s296] sm:$0x3] %v453
        %s456 = sand.u32 %s125, 1
        %s457 = scalar_lea.sflag [#allocation4], %s456
        %s458 = sand.u32 %s125, 1
        %s459 = smul.addr %s458, 2
        %s460 = scalar_lea.vmem [#allocation8], %s459
        %s461 = sand.u32 %s153, 1
        %s462 = scalar_lea.sflag [#allocation10], %s461
        %s463 = sand.u32 %s153, 1
        %s464 = smul.addr %s463, 2
        %s465 = scalar_lea.vmem [#allocation9], %s464
        // Predicated region
        $region45: #{tpu_custom_call.1} parent=31 // pred_check
          %p466 = pneg %p135
        $region46: #{tpu_custom_call.1} parent=31 // pred_check_branch
          %468 = sbr.rel (%p466) target = $region48
        $region47: #{tpu_custom_call.1} parent=31 // pred_region
          %s469 = smul.u32 2, %s31
          %s471 = ssub.s32 32, 32
          %472 = vsyncadd %s457, %s471
          %s473 = smul.addr %s30, 2
          %s474 = sadd.s32 %s469, %s473
          %s475 = smul.addr %s474, 16
          %s476 = scalar_lea.hbm %s3, %s475
          %s478 = sshll.u32 %s460, 4
          %s479 = int_to_ptr.vmem [resolvable:$true] %s478
          %481 = dma.vmem_to_hbm [thread:$0]  %s479, 32, %s476, %s457
        $region48: #{tpu_custom_call.1} parent=31 // pred_fallthru
          _
        // Predicated region
        $region49: #{tpu_custom_call.1} parent=31 // pred_check
          %p482 = pneg %p163
        $region50: #{tpu_custom_call.1} parent=31 // pred_check_branch
          %484 = sbr.rel (%p482) target = $region52
        $region51: #{tpu_custom_call.1} parent=31 // pred_region
          %s485 = smul.u32 2, %s31
          %s487 = ssub.s32 32, 32
          %488 = vsyncadd %s462, %s487
          %s489 = smul.addr %s30, 2
          %s490 = sadd.s32 %s485, %s489
          %s491 = smul.addr %s490, 16
          %s492 = scalar_lea.hbm %s4, %s491
          %s494 = sshll.u32 %s465, 4
          %s495 = int_to_ptr.vmem [resolvable:$true] %s494
          %497 = dma.vmem_to_hbm [thread:$0]  %s495, 32, %s492, %s462
        $region52: #{tpu_custom_call.1} parent=31 // pred_fallthru
          _
      $region32: #{tpu_custom_call.1} parent=5 // pred_fallthru
        _
      %p498 = scmp.le.s32.totalorder 2, %s21
      // Predicated region
      $region53: #{tpu_custom_call.1} parent=5 // pred_check
        %p499 = pneg %p498
      $region54: #{tpu_custom_call.1} parent=5 // pred_check_branch
        %501 = sbr.rel (%p499) target = $region56
      $region55: #{tpu_custom_call.1} parent=5 // pred_region
        %s502 = ssub.s32 %s21, 2
        // Predicated region
        $region57: #{tpu_custom_call.1} parent=55 // pred_check
          %p503 = pneg %p141
        $region58: #{tpu_custom_call.1} parent=55 // pred_check_branch
          %505 = sbr.rel (%p503) target = $region60
        $region59: #{tpu_custom_call.1} parent=55 // pred_region
          %s506 = sand.u32 %s126, 1
          %s507 = scalar_lea.sflag [#allocation4], %s506
          %s508 = sand.u32 %s126, 1
          %s509 = smul.addr %s508, 2
          %s510 = scalar_lea.vmem [#allocation8], %s509
          %511 = dma.done %s507, 32
        $region60: #{tpu_custom_call.1} parent=55 // pred_fallthru
          _
        // Predicated region
        $region61: #{tpu_custom_call.1} parent=55 // pred_check
          %p512 = pneg %p169
        $region62: #{tpu_custom_call.1} parent=55 // pred_check_branch
          %514 = sbr.rel (%p512) target = $region64
        $region63: #{tpu_custom_call.1} parent=55 // pred_region
          %s515 = sand.u32 %s154, 1
          %s516 = scalar_lea.sflag [#allocation10], %s515
          %s517 = sand.u32 %s154, 1
          %s518 = smul.addr %s517, 2
          %s519 = scalar_lea.vmem [#allocation9], %s518
          %520 = dma.done %s516, 32
        $region64: #{tpu_custom_call.1} parent=55 // pred_fallthru
          _
      $region56: #{tpu_custom_call.1} parent=5 // pred_fallthru
        _
    $region6: #{tpu_custom_call.1} parent=1 // loop_footer
      %s25 = sadd.s32 1, %s21
    $region7: #{tpu_custom_call.1} parent=1 // loop_footer_branch
      %20 = sbr.rel target = $region3
    $region8: #{tpu_custom_call.1} parent=1 // loop_exit
      _
    %521 = vsyncpa [#allocation3], 1
    %s522 = scalar_lea.sflag [#allocation3], 1
    %523 = vsyncpa %s522, 1
    %524 = vsyncpa [#allocation6], 1
    %s525 = scalar_lea.sflag [#allocation6], 1
    %526 = vsyncpa %s525, 1
    %527 = vsyncpa [#allocation4], 1
    %s528 = scalar_lea.sflag [#allocation4], 1
    %529 = vsyncpa %s528, 1
    %530 = vsyncpa [#allocation10], 1
    %s531 = scalar_lea.sflag [#allocation10], 1
    %532 = vsyncpa %s531, 1

</llo_original>
